<compile_context>
chip_gen: v5e
topology: v5e:2x2
jax: 0.10.0
libtpu: 0.0.40
codegen_flags: <defaults>
</compile_context>

<pallas_src>
import numpy as np
import jax
import jax.numpy as jnp
from jax.experimental import pallas as pl
from jax.experimental.pallas import tpu as pltpu


def _round_up(x, m):
    return (x + m - 1) // m * m


# --------------------------------------------------------------------------
# Pallas kernel: tiled matmul with fused bias add
# --------------------------------------------------------------------------
def _linear_kernel(x_ref, w_ref, b_ref, o_ref, acc_ref):
    """Grid = (M/TM, N/TN, K/TK); f32 accumulator resident across the K axis."""
    @pl.when(pl.program_id(2) == 0)
    def _():
        acc_ref[...] = jnp.zeros_like(acc_ref)

    acc_ref[...] += jnp.dot(x_ref[...], w_ref[...],
                            preferred_element_type=jnp.float32)

    @pl.when(pl.program_id(2) == pl.num_programs(2) - 1)
    def _():
        o_ref[...] = (acc_ref[...] + b_ref[...]).astype(o_ref.dtype)


# --------------------------------------------------------------------------
# Wrapper: y = x @ w.T + b   (PyTorch F.linear semantics)
# --------------------------------------------------------------------------
def linear(x, w, b, *, out_dtype=jnp.float32):
    *lead, K = x.shape
    N, K2 = w.shape
    assert K == K2, (K, K2)
    M = int(np.prod(lead)) if lead else 1

    x2 = x.reshape(M, K)
    wt = jnp.transpose(w)                      # (K, N)

    # Adaptive tile selection (multiples of (8, 128); shrink TM for tiny M).
    TM = min(256, _round_up(M, 8))
    TN = 256 if _round_up(N, 128) >= 256 else 128
    TK = min(512, _round_up(K, 128))

    Mp, Kp, Np = _round_up(M, TM), _round_up(K, TK), _round_up(N, TN)

    # bf16 operands for the MXU (f32 accumulation happens inside the kernel).
    a_p = x2 if (Mp == M and Kp == K) else jnp.pad(x2, ((0, Mp - M), (0, Kp - K)))
    a_p = a_p.astype(jnp.bfloat16)
    w_p = wt if (Kp == K and Np == N) else jnp.pad(wt, ((0, Kp - K), (0, Np - N)))
    w_p = w_p.astype(jnp.bfloat16)
    bias2 = b.astype(jnp.float32).reshape(1, N)
    bias_p = bias2 if Np == N else jnp.pad(bias2, ((0, 0), (0, Np - N)))

    out = pl.pallas_call(
        _linear_kernel,
        out_shape=jax.ShapeDtypeStruct((Mp, Np), out_dtype),
        grid_spec=pltpu.PrefetchScalarGridSpec(
            num_scalar_prefetch=0,
            grid=(Mp // TM, Np // TN, Kp // TK),
            in_specs=[
                pl.BlockSpec((TM, TK), lambda i, j, k: (i, k)),
                pl.BlockSpec((TK, TN), lambda i, j, k: (k, j)),
                pl.BlockSpec((1, TN), lambda i, j, k: (0, j)),
            ],
            out_specs=pl.BlockSpec((TM, TN), lambda i, j, k: (i, j)),
            scratch_shapes=[pltpu.VMEM((TM, TN), jnp.float32)],
        ),
        compiler_params=pltpu.CompilerParams(
            dimension_semantics=("parallel", "parallel", "arbitrary"),
            vmem_limit_bytes=32 * 1024 * 1024,
        ),
    )(a_p, w_p, bias_p)

    y = out if (Mp == M and Np == N) else out[:M, :N]
    return y.reshape(*lead, N) if lead else y.reshape(N)


def _ref_linear_bf16(x, w, b):
    """Reference with the same bf16-operand / f32-accumulate numerics."""
    *lead, K = x.shape
    x2 = x.reshape(-1, K).astype(jnp.bfloat16)
    y = jnp.dot(x2, w.T.astype(jnp.bfloat16),
                preferred_element_type=jnp.float32) + b.astype(jnp.float32)
    return y.reshape(*lead, w.shape[0])


# --------------------------------------------------------------------------
if __name__ == "__main__":
    key = jax.random.PRNGKey(0)
    kx, kw, kb = jax.random.split(key, 3)

    # Small case consistent with the module: batch=2, seq=8, in_c=32, out_c=128.
    in_c, out_c = 32, 128
    # Parameter init mirrors the PyTorch module: w ~ N(0,1)*sqrt(2/in_c), b ~ N(0,1).
    w = jax.random.normal(kw, (out_c, in_c), jnp.float32) * np.sqrt(2.0 / in_c)
    b = jax.random.normal(kb, (out_c,), jnp.float32)
    x = jax.random.normal(kx, (2, 8, in_c), jnp.float32)

    fwd = jax.jit(linear)
    y = jax.block_until_ready(fwd(x, w, b))
    assert y.shape == (2, 8, out_c), y.shape
    np.testing.assert_allclose(np.asarray(y), np.asarray(_ref_linear_bf16(x, w, b)),
                               rtol=1e-2, atol=1e-2)

    # Larger case exercising multi-block M/N/K grids and edge padding.
    M2, K2, N2 = 384, 640, 384
    x2 = jax.random.normal(jax.random.fold_in(key, 1), (M2, K2), jnp.float32)
    w2 = jax.random.normal(jax.random.fold_in(key, 2), (N2, K2), jnp.float32) * np.sqrt(2.0 / K2)
    b2 = jax.random.normal(jax.random.fold_in(key, 3), (N2,), jnp.float32)
    y2 = jax.block_until_ready(jax.jit(linear)(x2, w2, b2))
    assert y2.shape == (M2, N2), y2.shape
    np.testing.assert_allclose(np.asarray(y2), np.asarray(_ref_linear_bf16(x2, w2, b2)),
                               rtol=1e-2, atol=1e-2)

    assert bool(jnp.all(jnp.isfinite(y))) and bool(jnp.all(jnp.isfinite(y2)))
    print("KERNEL_OK")
</pallas_src>

<mosaic_0001>
module attributes {stable_mosaic.version = 11 : i64} {
  func.func @_linear_kernel(%arg0: i32, %arg1: i32, %arg2: i32, %arg3: memref<16x128xbf16, #tpu.memory_space<vmem>>, %arg4: memref<128x128xbf16, #tpu.memory_space<vmem>>, %arg5: memref<1x128xf32, #tpu.memory_space<vmem>>, %arg6: memref<16x128xf32, #tpu.memory_space<vmem>>, %arg7: memref<16x128xf32, #tpu.memory_space<vmem>>) attributes {dimension_semantics = [#tpu.dimension_semantics<parallel>, #tpu.dimension_semantics<parallel>, #tpu.dimension_semantics<arbitrary>], iteration_bounds = array<i64: 1, 1, 1>, scalar_prefetch = 0 : i64, scratch_operands = 1 : i64, tpu.core_type = #tpu.core_type<tc>, window_params = [{transform_indices = @transform_0, window_bounds = array<i64: 16, 128>}, {transform_indices = @transform_1, window_bounds = array<i64: 128, 128>}, {transform_indices = @transform_2, window_bounds = array<i64: 1, 128>}, {transform_indices = @transform_3, window_bounds = array<i64: 16, 128>}]} {
    %c0_i32 = arith.constant 0 : i32
    %0 = arith.cmpi eq, %arg2, %c0_i32 : i32
    %1 = arith.extui %0 : i1 to i32
    %c0_i32_0 = arith.constant 0 : i32
    %2 = arith.cmpi ne, %1, %c0_i32_0 : i32
    scf.if %2 {
      %cst_10 = arith.constant 0.000000e+00 : f32
      %12 = vector.broadcast %cst_10 : f32 to vector<16x128xf32>
      %c0_11 = arith.constant 0 : index
      %c0_12 = arith.constant 0 : index
      %13 = vector.load %arg7[%c0_11, %c0_12] : memref<16x128xf32, #tpu.memory_space<vmem>>, vector<16x128xf32>
      tpu.vector_store %arg7[%c0_11, %c0_12], %12 {strides = array<i32>} : memref<16x128xf32, #tpu.memory_space<vmem>>, vector<16x128xf32>,
    } else {
    }
    %c0 = arith.constant 0 : index
    %c0_1 = arith.constant 0 : index
    %3 = vector.load %arg7[%c0, %c0_1] : memref<16x128xf32, #tpu.memory_space<vmem>>, vector<16x128xf32>
    %c0_2 = arith.constant 0 : index
    %c0_3 = arith.constant 0 : index
    %4 = vector.load %arg3[%c0_2, %c0_3] : memref<16x128xbf16, #tpu.memory_space<vmem>>, vector<16x128xbf16>
    %c0_4 = arith.constant 0 : index
    %c0_5 = arith.constant 0 : index
    %5 = vector.load %arg4[%c0_4, %c0_5] : memref<128x128xbf16, #tpu.memory_space<vmem>>, vector<128x128xbf16>
    %cst = arith.constant dense<0.000000e+00> : vector<16x128xf32>
    %6 = tpu.matmul %4, %5, %cst {dimension_numbers = #tpu.dot_dimension_numbers<[1], [0], [0], [1], [0, 0, 1, 1], [], []>} : vector<16x128xbf16>, vector<128x128xbf16>, vector<16x128xf32> -> vector<16x128xf32>
    %7 = arith.addf %3, %6 : vector<16x128xf32>
    %c0_6 = arith.constant 0 : index
    %c0_7 = arith.constant 0 : index
    %8 = vector.load %arg7[%c0_6, %c0_7] : memref<16x128xf32, #tpu.memory_space<vmem>>, vector<16x128xf32>
    tpu.vector_store %arg7[%c0_6, %c0_7], %7 {strides = array<i32>} : memref<16x128xf32, #tpu.memory_space<vmem>>, vector<16x128xf32>,
    %c0_i32_8 = arith.constant 0 : i32
    %9 = arith.cmpi eq, %arg2, %c0_i32_8 : i32
    %10 = arith.extui %9 : i1 to i32
    %c0_i32_9 = arith.constant 0 : i32
    %11 = arith.cmpi ne, %10, %c0_i32_9 : i32
    scf.if %11 {
      %c0_10 = arith.constant 0 : index
      %c0_11 = arith.constant 0 : index
      %12 = vector.load %arg7[%c0_10, %c0_11] : memref<16x128xf32, #tpu.memory_space<vmem>>, vector<16x128xf32>
      %c0_12 = arith.constant 0 : index
      %c0_13 = arith.constant 0 : index
      %13 = vector.load %arg5[%c0_12, %c0_13] : memref<1x128xf32, #tpu.memory_space<vmem>>, vector<1x128xf32>
      %14 = vector.broadcast %13 : vector<1x128xf32> to vector<16x128xf32>
      %15 = arith.addf %12, %14 : vector<16x128xf32>
      %c0_14 = arith.constant 0 : index
      %c0_15 = arith.constant 0 : index
      %16 = vector.load %arg6[%c0_14, %c0_15] : memref<16x128xf32, #tpu.memory_space<vmem>>, vector<16x128xf32>
      tpu.vector_store %arg6[%c0_14, %c0_15], %15 {strides = array<i32>} : memref<16x128xf32, #tpu.memory_space<vmem>>, vector<16x128xf32>,
    } else {
    }
    return
  }
  func.func @transform_0(%arg0: i32, %arg1: i32, %arg2: i32) -> (i32, i32) {
    %c0_i32 = arith.constant 0 : i32
    return %arg0, %arg2 : i32, i32
  }
  func.func @transform_1(%arg0: i32, %arg1: i32, %arg2: i32) -> (i32, i32) {
    %c0_i32 = arith.constant 0 : i32
    return %arg2, %arg1 : i32, i32
  }
  func.func @transform_2(%arg0: i32, %arg1: i32, %arg2: i32) -> (i32, i32) {
    %c0_i32 = arith.constant 0 : i32
    %c0_i32_0 = arith.constant 0 : i32
    return %c0_i32, %arg1 : i32, i32
  }
  func.func @transform_3(%arg0: i32, %arg1: i32, %arg2: i32) -> (i32, i32) {
    %c0_i32 = arith.constant 0 : i32
    return %arg0, %arg1 : i32, i32
  }
}

</mosaic_0001>

<llo_original>
// kernel: linear.1
$region0: #{linear.1}
  #allocation0 [shape = 'u32[]', space=smem, size = 0x4, offset = 0x4, fixed_abs, tag = 'smem constant byte address 0x4 - core index']
  #allocation1 [shape = 'u32[72,128]{1,0:T(1,128)}', space=vmem, size = 0x9000, scoped, tag = 'internal scratch']
  #allocation2 [shape = 'f32[16,128]{1,0:T(8,128)}', space=vmem, size = 0x2000, scoped, tag = 'scratch operand']
  %s0 = inlined_call_operand.vmem [shape: bf16[16,128], index: 0, kind: input, shape index: {}]
  %s1 = inlined_call_operand.vmem [shape: bf16[128,128], index: 1, kind: input, shape index: {}]
  %s2 = inlined_call_operand.vmem [shape: f32[1,128], index: 2, kind: input, shape index: {}]
  %s3 = inlined_call_operand.hbm [shape: f32[16,128], index: 3, kind: output, shape index: {}]
  %s4 = sld [smem:[#allocation0]]
  $region30: #{linear.1} parent=0
    _
  %s6 = ssub.s32 1, %s4
  %s7 = scalar_select 0, %s6, %s4
  $region1: #{linear.1} parent=0
    #allocation3 [shape = 'u8[8192]{0}', space=vmem, size = 0x2000, scoped, tag = 'output window, operand 0, single buffered']
    #allocation4 [shape = 's32[1]{0}', space=sflag, size = 0x4, scoped, tag = 'scoped memory for linear.1']
    %8 = vsyncpa [#allocation4], 0
    // Predicated region
    $region2: #{linear.1} parent=1 // pred_check
      _
    $region3: #{linear.1} parent=1 // pred_check_branch
      %10 = sbr.rel (0) target = $region5
    $region4: #{linear.1} parent=1 // pred_region
      _
    $region5: #{linear.1} parent=1 // pred_fallthru
      _
    // Predicated region
    $region6: #{linear.1} parent=1 // pred_check
      _
    $region7: #{linear.1} parent=1 // pred_check_branch
      %12 = sbr.rel (0) target = $region9
    $region8: #{linear.1} parent=1 // pred_region
      _
    $region9: #{linear.1} parent=1 // pred_fallthru
      _
    // Predicated region
    $region10: #{linear.1} parent=1 // pred_check
      _
    $region11: #{linear.1} parent=1 // pred_check_branch
      %14 = sbr.rel (0) target = $region13
    $region12: #{linear.1} parent=1 // pred_region
      _
    $region13: #{linear.1} parent=1 // pred_fallthru
      _
    %p15 = scmp.eq.s32.totalorder 0, 0
    // Predicated region
    $region14: #{linear.1} parent=1 // pred_check
      %p16 = pneg %p15
    $region15: #{linear.1} parent=1 // pred_check_branch
      %18 = sbr.rel (%p16) target = $region17
    $region16: #{linear.1} parent=1 // pred_region
      %19 = vst [vmem:[#allocation2] sm:$0xff] 0.0
      %20 = vst [vmem:[#allocation2 + $0x8] sm:$0xff] 0.0
    $region17: #{linear.1} parent=1 // pred_fallthru
      _
    %v21 = vld [vmem:[#allocation2] sm:$0xff]
    %v22 = vld [vmem:[#allocation2 + $0x8] sm:$0xff]
    %v23 = vld [vmem:[%s0] sm:$0xf]
    %v24 = vld [vmem:[%s0 + $0x4] sm:$0xf]
    %v25 = vld [vmem:[%s1] sm:$0xf]
    %v26 = vld [vmem:[%s1 + $0x4] sm:$0xf]
    %v27 = vld [vmem:[%s1 + $0x8] sm:$0xf]
    %v28 = vld [vmem:[%s1 + $0xc] sm:$0xf]
    %v29 = vld [vmem:[%s1 + $0x10] sm:$0xf]
    %v30 = vld [vmem:[%s1 + $0x14] sm:$0xf]
    %v31 = vld [vmem:[%s1 + $0x18] sm:$0xf]
    %v32 = vld [vmem:[%s1 + $0x1c] sm:$0xf]
    %v33 = vld [vmem:[%s1 + $0x20] sm:$0xf]
    %v34 = vld [vmem:[%s1 + $0x24] sm:$0xf]
    %v35 = vld [vmem:[%s1 + $0x28] sm:$0xf]
    %v36 = vld [vmem:[%s1 + $0x2c] sm:$0xf]
    %v37 = vld [vmem:[%s1 + $0x30] sm:$0xf]
    %v38 = vld [vmem:[%s1 + $0x34] sm:$0xf]
    %v39 = vld [vmem:[%s1 + $0x38] sm:$0xf]
    %v40 = vld [vmem:[%s1 + $0x3c] sm:$0xf]
    %v43 = vunpack.c.l.b16 %v23
    %v44 = vunpack.c.l.b16 %v24
    %v45 = vpack.c.b16 %v44, %v43
    %v63 = vunpack.c.l.b16 %v25
    %v64 = vunpack.c.l.b16 %v26
    %v65 = vunpack.c.l.b16 %v27
    %v66 = vunpack.c.l.b16 %v28
    %v67 = vunpack.c.l.b16 %v29
    %v68 = vunpack.c.l.b16 %v30
    %v69 = vunpack.c.l.b16 %v31
    %v70 = vunpack.c.l.b16 %v32
    %v71 = vunpack.c.l.b16 %v33
    %v72 = vunpack.c.l.b16 %v34
    %v73 = vunpack.c.l.b16 %v35
    %v74 = vunpack.c.l.b16 %v36
    %v75 = vunpack.c.l.b16 %v37
    %v76 = vunpack.c.l.b16 %v38
    %v77 = vunpack.c.l.b16 %v39
    %v78 = vunpack.c.l.b16 %v40
    %v79 = vpack.c.b16 %v64, %v63
    %v80 = vpack.c.b16 %v66, %v65
    %v81 = vpack.c.b16 %v68, %v67
    %v82 = vpack.c.b16 %v70, %v69
    %v83 = vpack.c.b16 %v72, %v71
    %v84 = vpack.c.b16 %v74, %v73
    %v85 = vpack.c.b16 %v76, %v75
    %v86 = vpack.c.b16 %v78, %v77
    %95 = vmatpush.bf16.msra.mxu0 %v86
    %96 = vmatpush.bf16.msra.mxu0 %v85
    %97 = vmatpush.bf16.msra.mxu0 %v84
    %98 = vmatpush.bf16.msra.mxu0 %v83
    %99 = vmatpush.bf16.msra.mxu0 %v82
    %100 = vmatpush.bf16.msra.mxu0 %v81
    %101 = vmatpush.bf16.msra.mxu0 %v80
    %102 = vmatpush.bf16.msra.mxu0 %v79
    %103 = vmatmul.bf16.gmra.mxu0 %v45
    %v104 = vpop.f32.mrf.mxu0
    %v105 = vadd.f32 0.0, %v104
    %v106 = vpop.f32.mrf.mxu0
    %v107 = vadd.f32 0.0, %v106
    %108 = vdwg.mxu0
    %v109 = vadd.f32 %v21, %v105
    %v110 = vadd.f32 %v22, %v107
    %111 = vst [vmem:[#allocation2] sm:$0xff] %v109
    %112 = vst [vmem:[#allocation2 + $0x8] sm:$0xff] %v110
    // Predicated region
    $region18: #{linear.1} parent=1 // pred_check
      %p113 = pneg %p15
    $region19: #{linear.1} parent=1 // pred_check_branch
      %115 = sbr.rel (%p113) target = $region21
    $region20: #{linear.1} parent=1 // pred_region
      %v116 = vld [vmem:[#allocation2] sm:$0xff]
      %v117 = vld [vmem:[#allocation2 + $0x8] sm:$0xff]
      %v118 = vld [vmem:[%s2] sm:$0x1]
      %v120 = vperm.slane %v118, 0
      %v122 = vadd.f32 %v116, %v120
      %v123 = vadd.f32 %v117, %v120
      %124 = vst [vmem:[#allocation3] sm:$0xff] %v122
      %125 = vst [vmem:[#allocation3 + $0x8] sm:$0xff] %v123
    $region21: #{linear.1} parent=1 // pred_fallthru
      _
    // Predicated region
    $region22: #{linear.1} parent=1 // pred_check
      _
    $region23: #{linear.1} parent=1 // pred_check_branch
      %127 = sbr.rel (0) target = $region25
    $region24: #{linear.1} parent=1 // pred_region
      %129 = vsyncadd [#allocation4], 0
      %s130 = sshll.u32 [#allocation3], 4
      %s131 = int_to_ptr.vmem [resolvable:$true] %s130
      %s132 = sshll.u32 %s3, 4
      %s133 = int_to_ptr.hbm [resolvable:$true] %s132
      %138 = dma.vmem_to_hbm [thread:$0]  %s131, 256, %s133, [#allocation4], 128, 128, 8
    $region25: #{linear.1} parent=1 // pred_fallthru
      _
    // Predicated region
    $region26: #{linear.1} parent=1 // pred_check
      _
    $region27: #{linear.1} parent=1 // pred_check_branch
      %140 = sbr.rel (0) target = $region29
    $region28: #{linear.1} parent=1 // pred_region
      %142 = dma.done [#allocation4], 256
    $region29: #{linear.1} parent=1 // pred_fallthru
      _
    %143 = vsyncpa [#allocation4], 1

</llo_original>
